<compile_context>
chip_gen: v7x
topology: tpu7x:2x2x1
jax: 0.10.0
libtpu: 0.0.40
codegen_flags: <defaults>
</compile_context>

<pallas_src>
import functools

import jax
import jax.numpy as jnp
from jax.experimental import pallas as pl
from jax.experimental.pallas import tpu as pltpu

_LANES = 128


def _round_up(n, m):
    return ((n + m - 1) // m) * m


def _decoder_kernel(in_dim, hidden, latent_dim, out_dim,
                    xT_ref, latT_ref, w_ref, b_ref, out_ref):
    """Batch-in-lanes 4-layer MLP: every activation is [features, TB]."""
    cdt = w_ref.dtype                     # MXU input dtype (bf16 or f32)

    # Static slices of the packed [3*hidden + out_dim, max_in] weight slab.
    w1 = w_ref[0:hidden, 0:in_dim]                                   # [H, I]
    w2 = w_ref[hidden:2 * hidden, 0:hidden]                          # [H, H]
    w3h = w_ref[2 * hidden:3 * hidden, 0:hidden]                     # [H, H]
    w3l = w_ref[2 * hidden:3 * hidden, hidden:hidden + latent_dim]   # [H, L]
    w4 = w_ref[3 * hidden:3 * hidden + out_dim, 0:hidden]            # [O, H]

    b1 = b_ref[0:hidden, :]                                          # [H, 1] f32
    b2 = b_ref[hidden:2 * hidden, :]
    b3 = b_ref[2 * hidden:3 * hidden, :]
    b4 = b_ref[3 * hidden:3 * hidden + out_dim, :]

    x = xT_ref[...]                                                  # [I, TB]
    lat = latT_ref[...]                                              # [L, TB]

    # fc1 + relu
    h = jnp.dot(w1, x, preferred_element_type=jnp.float32) + b1
    h = jnp.maximum(h, 0.0).astype(cdt)
    # fc2 + relu
    h = jnp.dot(w2, h, preferred_element_type=jnp.float32) + b2
    h = jnp.maximum(h, 0.0).astype(cdt)
    # fc3 over cat((h, latent), -1), split into two matmuls; + relu
    h = (jnp.dot(w3h, h, preferred_element_type=jnp.float32)
         + jnp.dot(w3l, lat, preferred_element_type=jnp.float32) + b3)
    h = jnp.maximum(h, 0.0).astype(cdt)
    # fc4 (no activation)
    out = jnp.dot(w4, h, preferred_element_type=jnp.float32) + b4
    out_ref[...] = out.astype(out_ref.dtype)


def _pack_params(params, in_dim, hidden, latent_dim, out_dim, compute_dtype):
    """Pack 8 parameter arrays into one weight slab + one bias column."""
    (w1, b1, w2, b2, w3, b3, w4, b4) = params   # torch layout: W [out, in], b [out]
    max_in = max(in_dim, hidden, hidden + latent_dim)

    def pad_in(w):
        return jnp.pad(w, ((0, 0), (0, max_in - w.shape[1])))

    w_packed = jnp.concatenate(
        [pad_in(w1), pad_in(w2), pad_in(w3), pad_in(w4)], axis=0
    ).astype(compute_dtype)                                           # [3H+O, max_in]
    b_packed = jnp.concatenate([b1, b2, b3, b4])[:, None].astype(jnp.float32)  # [3H+O, 1]
    return w_packed, b_packed


def _choose_batch_tile(B):
    # Lane-aligned batch tile (multiple of 128), capped at 512 rows.  For
    # larger B keep >= 2 grid steps so the "parallel" batch axis can shard
    # across v7x's two TensorCores.
    if B <= 2 * _LANES:
        return _round_up(B, _LANES)
    return min(512, _round_up(pl.cdiv(B, 2), _LANES))


def _reference_forward(x, latent, params):
    """Pure-JAX reference; also the small-batch fast path."""
    if latent.ndim == 3:
        latent = jnp.squeeze(latent, axis=0)
    (w1, b1, w2, b2, w3, b3, w4, b4) = params
    h = jax.nn.relu(x @ w1.T + b1)
    h = jax.nn.relu(h @ w2.T + b2)
    h = jnp.concatenate((h, latent), axis=-1)
    h = jax.nn.relu(h @ w3.T + b3)
    return h @ w4.T + b4


def decoder_forward(x, latent, params, *, use_bf16=True, min_pallas_batch=64):
    """Pallas equivalent of Decoder.forward(x, latent)."""
    if latent.ndim == 3:            # mirrors `latent.squeeze(0)` for 3-D latents
        latent = jnp.squeeze(latent, axis=0)

    (w1, _, _, _, w3, _, w4, _) = params
    out_dim, hidden = w4.shape
    in_dim = w1.shape[1]
    latent_dim = w3.shape[1] - hidden
    B = x.shape[0]

    # Tiny batches: fused XLA dot chain beats pallas_call launch + DMA setup.
    if B <= min_pallas_batch:
        return _reference_forward(x, latent, params)

    assert hidden % 8 == 0, \
        "hidden_dim must be sublane (8) aligned for the static in-kernel slices"

    compute_dtype = jnp.bfloat16 if use_bf16 else jnp.float32
    w_packed, b_packed = _pack_params(params, in_dim, hidden, latent_dim,
                                      out_dim, compute_dtype)

    TB = _choose_batch_tile(B)
    B_pad = _round_up(B, TB)

    # Batch-in-lanes: activations as [features, batch], batch padded to TB.
    xT = jnp.pad(x.T.astype(compute_dtype), ((0, 0), (0, B_pad - B)))
    latT = jnp.pad(latent.T.astype(compute_dtype), ((0, 0), (0, B_pad - B)))

    grid = (B_pad // TB,)

    flops = 2 * B_pad * (in_dim * hidden + hidden * hidden
                         + (hidden + latent_dim) * hidden + hidden * out_dim)
    bytes_accessed = (xT.size * xT.dtype.itemsize
                      + latT.size * latT.dtype.itemsize
                      + w_packed.size * w_packed.dtype.itemsize
                      + b_packed.size * b_packed.dtype.itemsize
                      + B_pad * out_dim * 4)

    out_T = pl.pallas_call(
        functools.partial(_decoder_kernel, in_dim, hidden, latent_dim, out_dim),
        out_shape=jax.ShapeDtypeStruct((out_dim, B_pad), jnp.float32),
        grid=grid,
        in_specs=[
            pl.BlockSpec((in_dim, TB), lambda i: (0, i)),        # xT, batch-tiled
            pl.BlockSpec((latent_dim, TB), lambda i: (0, i)),    # latentT, batch-tiled
            pl.BlockSpec(w_packed.shape, lambda i: (0, 0)),      # weights, VMEM-resident
            pl.BlockSpec(b_packed.shape, lambda i: (0, 0)),      # biases, VMEM-resident
        ],
        out_specs=pl.BlockSpec((out_dim, TB), lambda i: (0, i)),  # lane-dense output
        compiler_params=pltpu.CompilerParams(
            dimension_semantics=("parallel",)),
        cost_estimate=pl.CostEstimate(flops=flops, transcendentals=0,
                                      bytes_accessed=bytes_accessed),
    )(xT, latT, w_packed, b_packed)

    return out_T[:, :B].T


def init_decoder_params(key, input_dim1, hidden_dim, latent_dim, output_dim1):
    """Deterministic synthetic params, torch layout: W [out, in], b [out]."""
    ks = jax.random.split(key, 8)

    def lin(kw, kb, fan_in, fan_out):
        bound = 1.0 / jnp.sqrt(fan_in)
        w = jax.random.uniform(kw, (fan_out, fan_in), jnp.float32, -bound, bound)
        b = jax.random.uniform(kb, (fan_out,), jnp.float32, -bound, bound)
        return w, b

    w1, b1 = lin(ks[0], ks[1], input_dim1, hidden_dim)
    w2, b2 = lin(ks[2], ks[3], hidden_dim, hidden_dim)
    w3, b3 = lin(ks[4], ks[5], hidden_dim + latent_dim, hidden_dim)
    w4, b4 = lin(ks[6], ks[7], hidden_dim, output_dim1)
    return (w1, b1, w2, b2, w3, b3, w4, b4)


if __name__ == "__main__":
    input_dim1, hidden_dim, latent_dim, output_dim1 = 16, 32, 8, 4

    key = jax.random.PRNGKey(0)
    k_p, k_x1, k_l1, k_x2, k_l2 = jax.random.split(key, 5)
    params = init_decoder_params(k_p, input_dim1, hidden_dim, latent_dim, output_dim1)

    # --- small batch (B=8), 3-D latent: takes the fused-XLA fallback path ---
    xs = jax.random.normal(k_x1, (8, input_dim1), jnp.float32)
    lats = jax.random.normal(k_l1, (1, 8, latent_dim), jnp.float32)   # gets squeezed
    outs = jax.block_until_ready(decoder_forward(xs, lats, params))
    refs = _reference_forward(xs, lats, params)
    assert outs.shape == (8, output_dim1)
    assert jnp.allclose(outs, refs, atol=1e-5, rtol=1e-5)

    # --- larger, non-multiple-of-128 batch: exercises the Pallas kernel,
    #     batch padding, and the >=2-step (megacore-friendly) grid ---
    B = 515
    xl = jax.random.normal(k_x2, (B, input_dim1), jnp.float32)
    latl = jax.random.normal(k_l2, (B, latent_dim), jnp.float32)
    refl = _reference_forward(xl, latl, params)

    # Exact-f32 kernel path.
    out_f32 = jax.block_until_ready(
        decoder_forward(xl, latl, params, use_bf16=False))
    assert out_f32.shape == (B, output_dim1)
    assert jnp.allclose(out_f32, refl, atol=1e-4, rtol=1e-4)

    # Default bf16-MXU path (f32 accumulation) — loose tolerance vs f32 reference.
    out_bf16 = jax.block_until_ready(decoder_forward(xl, latl, params))
    assert out_bf16.shape == (B, output_dim1)
    assert jnp.allclose(out_bf16, refl, atol=5e-2, rtol=5e-2)

    print("KERNEL_OK")
</pallas_src>

<mosaic_0001>
module attributes {stable_mosaic.version = 11 : i64} {
  func.func @_decoder_kernel(%arg0: i32, %arg1: memref<16x384xf32, #tpu.memory_space<vmem>>, %arg2: memref<8x384xf32, #tpu.memory_space<vmem>>, %arg3: memref<100x40xf32, #tpu.memory_space<vmem>>, %arg4: memref<100x1xf32, #tpu.memory_space<vmem>>, %arg5: memref<4x384xf32, #tpu.memory_space<vmem>>) attributes {dimension_semantics = [#tpu.dimension_semantics<parallel>], iteration_bounds = array<i64: 2>, scalar_prefetch = 0 : i64, scratch_operands = 0 : i64, tpu.core_type = #tpu.core_type<tc>, window_params = [{transform_indices = @transform_0, window_bounds = array<i64: 16, 384>}, {transform_indices = @transform_1, window_bounds = array<i64: 8, 384>}, {pipeline_mode = #tpu.pipeline_mode<synchronous>, transform_indices = @transform_2, window_bounds = array<i64: 100, 40>}, {pipeline_mode = #tpu.pipeline_mode<synchronous>, transform_indices = @transform_3, window_bounds = array<i64: 100, 1>}, {transform_indices = @transform_4, window_bounds = array<i64: 4, 384>}]} {
    %c0 = arith.constant 0 : index
    %c0_0 = arith.constant 0 : index
    %0 = vector.load %arg3[%c0, %c0_0] : memref<100x40xf32, #tpu.memory_space<vmem>>, vector<32x16xf32>
    %c32 = arith.constant 32 : index
    %c0_1 = arith.constant 0 : index
    %1 = vector.load %arg3[%c32, %c0_1] : memref<100x40xf32, #tpu.memory_space<vmem>>, vector<32x32xf32>
    %c64 = arith.constant 64 : index
    %c0_2 = arith.constant 0 : index
    %2 = vector.load %arg3[%c64, %c0_2] : memref<100x40xf32, #tpu.memory_space<vmem>>, vector<32x32xf32>
    %c64_3 = arith.constant 64 : index
    %c32_4 = arith.constant 32 : index
    %3 = vector.load %arg3[%c64_3, %c32_4] : memref<100x40xf32, #tpu.memory_space<vmem>>, vector<32x8xf32>
    %c96 = arith.constant 96 : index
    %c0_5 = arith.constant 0 : index
    %4 = vector.load %arg3[%c96, %c0_5] : memref<100x40xf32, #tpu.memory_space<vmem>>, vector<4x32xf32>
    %c0_6 = arith.constant 0 : index
    %c0_7 = arith.constant 0 : index
    %5 = vector.load %arg4[%c0_6, %c0_7] : memref<100x1xf32, #tpu.memory_space<vmem>>, vector<32x1xf32>
    %c32_8 = arith.constant 32 : index
    %c0_9 = arith.constant 0 : index
    %6 = vector.load %arg4[%c32_8, %c0_9] : memref<100x1xf32, #tpu.memory_space<vmem>>, vector<32x1xf32>
    %c64_10 = arith.constant 64 : index
    %c0_11 = arith.constant 0 : index
    %7 = vector.load %arg4[%c64_10, %c0_11] : memref<100x1xf32, #tpu.memory_space<vmem>>, vector<32x1xf32>
    %c96_12 = arith.constant 96 : index
    %c0_13 = arith.constant 0 : index
    %8 = vector.load %arg4[%c96_12, %c0_13] : memref<100x1xf32, #tpu.memory_space<vmem>>, vector<4x1xf32>
    %c0_14 = arith.constant 0 : index
    %c0_15 = arith.constant 0 : index
    %9 = vector.load %arg1[%c0_14, %c0_15] : memref<16x384xf32, #tpu.memory_space<vmem>>, vector<16x384xf32>
    %c0_16 = arith.constant 0 : index
    %c0_17 = arith.constant 0 : index
    %10 = vector.load %arg2[%c0_16, %c0_17] : memref<8x384xf32, #tpu.memory_space<vmem>>, vector<8x384xf32>
    %cst = arith.constant dense<0.000000e+00> : vector<32x384xf32>
    %11 = tpu.matmul %0, %9, %cst {dimension_numbers = #tpu.dot_dimension_numbers<[1], [0], [0], [1], [0, 0, 1, 1], [], []>} : vector<32x16xf32>, vector<16x384xf32>, vector<32x384xf32> -> vector<32x384xf32>
    %12 = vector.broadcast %5 : vector<32x1xf32> to vector<32x384xf32>
    %13 = arith.addf %11, %12 : vector<32x384xf32>
    %cst_18 = arith.constant 0.000000e+00 : f32
    %14 = vector.broadcast %cst_18 : f32 to vector<32x384xf32>
    %15 = arith.maximumf %13, %14 : vector<32x384xf32>
    %cst_19 = arith.constant dense<0.000000e+00> : vector<32x384xf32>
    %16 = tpu.matmul %1, %15, %cst_19 {dimension_numbers = #tpu.dot_dimension_numbers<[1], [0], [0], [1], [0, 0, 1, 1], [], []>} : vector<32x32xf32>, vector<32x384xf32>, vector<32x384xf32> -> vector<32x384xf32>
    %17 = vector.broadcast %6 : vector<32x1xf32> to vector<32x384xf32>
    %18 = arith.addf %16, %17 : vector<32x384xf32>
    %cst_20 = arith.constant 0.000000e+00 : f32
    %19 = vector.broadcast %cst_20 : f32 to vector<32x384xf32>
    %20 = arith.maximumf %18, %19 : vector<32x384xf32>
    %cst_21 = arith.constant dense<0.000000e+00> : vector<32x384xf32>
    %21 = tpu.matmul %2, %20, %cst_21 {dimension_numbers = #tpu.dot_dimension_numbers<[1], [0], [0], [1], [0, 0, 1, 1], [], []>} : vector<32x32xf32>, vector<32x384xf32>, vector<32x384xf32> -> vector<32x384xf32>
    %cst_22 = arith.constant dense<0.000000e+00> : vector<32x384xf32>
    %22 = tpu.matmul %3, %10, %cst_22 {dimension_numbers = #tpu.dot_dimension_numbers<[1], [0], [0], [1], [0, 0, 1, 1], [], []>} : vector<32x8xf32>, vector<8x384xf32>, vector<32x384xf32> -> vector<32x384xf32>
    %23 = arith.addf %21, %22 : vector<32x384xf32>
    %24 = vector.broadcast %7 : vector<32x1xf32> to vector<32x384xf32>
    %25 = arith.addf %23, %24 : vector<32x384xf32>
    %cst_23 = arith.constant 0.000000e+00 : f32
    %26 = vector.broadcast %cst_23 : f32 to vector<32x384xf32>
    %27 = arith.maximumf %25, %26 : vector<32x384xf32>
    %cst_24 = arith.constant dense<0.000000e+00> : vector<4x384xf32>
    %28 = tpu.matmul %4, %27, %cst_24 {dimension_numbers = #tpu.dot_dimension_numbers<[1], [0], [0], [1], [0, 0, 1, 1], [], []>} : vector<4x32xf32>, vector<32x384xf32>, vector<4x384xf32> -> vector<4x384xf32>
    %29 = vector.broadcast %8 : vector<4x1xf32> to vector<4x384xf32>
    %30 = arith.addf %28, %29 : vector<4x384xf32>
    %c0_25 = arith.constant 0 : index
    %c0_26 = arith.constant 0 : index
    %31 = vector.load %arg5[%c0_25, %c0_26] : memref<4x384xf32, #tpu.memory_space<vmem>>, vector<4x384xf32>
    tpu.vector_store %arg5[%c0_25, %c0_26], %30 {strides = array<i32>} : memref<4x384xf32, #tpu.memory_space<vmem>>, vector<4x384xf32>,
    return
  }
  func.func @transform_0(%arg0: i32) -> (i32, i32) {
    %c0_i32 = arith.constant 0 : i32
    %c0_i32_0 = arith.constant 0 : i32
    return %c0_i32, %arg0 : i32, i32
  }
  func.func @transform_1(%arg0: i32) -> (i32, i32) {
    %c0_i32 = arith.constant 0 : i32
    %c0_i32_0 = arith.constant 0 : i32
    return %c0_i32, %arg0 : i32, i32
  }
  func.func @transform_2(%arg0: i32) -> (i32, i32) {
    %c0_i32 = arith.constant 0 : i32
    %c0_i32_0 = arith.constant 0 : i32
    %c0_i32_1 = arith.constant 0 : i32
    return %c0_i32, %c0_i32_0 : i32, i32
  }
  func.func @transform_3(%arg0: i32) -> (i32, i32) {
    %c0_i32 = arith.constant 0 : i32
    %c0_i32_0 = arith.constant 0 : i32
    %c0_i32_1 = arith.constant 0 : i32
    return %c0_i32, %c0_i32_0 : i32, i32
  }
  func.func @transform_4(%arg0: i32) -> (i32, i32) {
    %c0_i32 = arith.constant 0 : i32
    %c0_i32_0 = arith.constant 0 : i32
    return %c0_i32, %arg0 : i32, i32
  }
}

</mosaic_0001>

<llo_original>
// kernel: tpu_custom_call.1
$region0: #{tpu_custom_call.1}
  #allocation0 [shape = 'u32[]', space=smem, size = 0x4, offset = 0x4, fixed_abs, tag = 'smem constant byte address 0x4 - core index']
  #allocation1 [shape = 'u32[144,128]{1,0:T(1,128)}', space=vmem, size = 0x12000, scoped, tag = 'internal scratch']
  %s0 = inlined_call_operand.vmem [shape: f32[16,768], index: 0, kind: input, shape index: {}]
  %s1 = inlined_call_operand.vmem [shape: f32[8,768], index: 1, kind: input, shape index: {}]
  %s2 = inlined_call_operand.vmem [shape: f32[100,40], index: 2, kind: input, shape index: {}]
  %s3 = inlined_call_operand.vmem [shape: f32[100,1], index: 3, kind: input, shape index: {}]
  %s4 = inlined_call_operand.hbm [shape: f32[4,768], index: 4, kind: output, shape index: {}]
  %s5 = sld [smem:[#allocation0]]
  $region72: #{tpu_custom_call.1} parent=0
    _
  %s7 = ssub.s32 1, %s5
  %s8 = scalar_select 0, %s7, %s5
  $region1: #{tpu_custom_call.1} parent=0
    #allocation2 [shape = 'u8[49152]{0}', space=vmem, size = 0xc000, scoped, tag = 'input window, operand 0']
    #allocation3 [shape = 'u8[12288]{0}', space=vmem, size = 0x3000, scoped, tag = 'output window, operand 0']
    #allocation4 [shape = 's32[2]{0}', space=sflag, size = 0x8, scoped, tag = 'scoped memory for tpu_custom_call.1']
    %9 = vsyncpa [#allocation4], 0
    %s10 = scalar_lea.sflag [#allocation4], 1
    %11 = vsyncpa %s10, 0
    loop: start=0, step=1, limit=4
    $region2: #{tpu_custom_call.1} parent=1 // loop_pre_header
      _
    $region3: #{tpu_custom_call.1} parent=1 // loop_header
      %s13 = sphi 0, %s17
      %p14 = scmp.ge.s32.totalorder %s13, 4
      %s23 = sphi 0, %s25
      %s26 = sphi 0, %s23
      %s27 = sphi 0, %s26
      %s43 = sphi 0, %s27
      %s49 = sphi 0, %s51
      %s52 = sphi 0, %s49
      %s53 = sphi 0, %s52
      %s69 = sphi 0, %s53
      %s73 = sphi 0, %s73
      %s75 = sphi 0, %s73
      %s76 = sphi 0, %s75
      %s90 = sphi 0, %s76
      %s94 = sphi 0, %s94
      %s96 = sphi 0, %s94
      %s97 = sphi 0, %s96
      %s111 = sphi 0, %s97
      %s117 = sphi 0, %s119
      %s120 = sphi 0, %s117
      %s121 = sphi 0, %s120
      %s137 = sphi 0, %s121
    $region4: #{tpu_custom_call.1} parent=1 // loop_header_branch
      %16 = sbr.rel (%p14) target = $region8
    $region5: #{tpu_custom_call.1} parent=1 // loop_body
      %s18 = ssub.s32 %s13, 1
      %s19 = ssub.s32 %s13, 2
      %s20 = sadd.s32 %s13, 1
      %s21 = ssub.s32 %s13, %s20
      %p22 = scmp.eq.s32.totalorder %s21, 0
      %s24 = sadd.s32 %s23, 1
      %s25 = scalar_select %p22, %s23, %s24
      %p28 = pneg %p22
      %p29 = scmp.eq.s32.totalorder %s13, 1
      %p30 = por %p28, %p29
      %p31 = scmp.ne.s32.totalorder %s23, %s26
      %p32 = scmp.eq.s32.totalorder %s13, 0
      %p33 = por %p31, %p32
      %p34 = scmp.ne.s32.totalorder %s23, %s26
      %p35 = scmp.eq.s32.totalorder %s18, 1
      %p36 = por %p34, %p35
      %p37 = scmp.ne.s32.totalorder %s26, %s27
      %p38 = scmp.eq.s32.totalorder %s18, 0
      %p39 = por %p37, %p38
      %p40 = scmp.ne.s32.totalorder %s26, %s27
      %p41 = scmp.eq.s32.totalorder %s19, 1
      %p42 = por %p40, %p41
      %p44 = scmp.ne.s32.totalorder %s27, %s43
      %p45 = scmp.eq.s32.totalorder %s19, 0
      %p46 = por %p44, %p45
      %s47 = ssub.s32 %s13, %s20
      %p48 = scmp.eq.s32.totalorder %s47, 0
      %s50 = sadd.s32 %s49, 1
      %s51 = scalar_select %p48, %s49, %s50
      %p54 = pneg %p48
      %p55 = scmp.eq.s32.totalorder %s13, 1
      %p56 = por %p54, %p55
      %p57 = scmp.ne.s32.totalorder %s49, %s52
      %p58 = scmp.eq.s32.totalorder %s13, 0
      %p59 = por %p57, %p58
      %p60 = scmp.ne.s32.totalorder %s49, %s52
      %p61 = scmp.eq.s32.totalorder %s18, 1
      %p62 = por %p60, %p61
      %p63 = scmp.ne.s32.totalorder %s52, %s53
      %p64 = scmp.eq.s32.totalorder %s18, 0
      %p65 = por %p63, %p64
      %p66 = scmp.ne.s32.totalorder %s52, %s53
      %p67 = scmp.eq.s32.totalorder %s19, 1
      %p68 = por %p66, %p67
      %p70 = scmp.ne.s32.totalorder %s53, %s69
      %p71 = scmp.eq.s32.totalorder %s19, 0
      %p72 = por %p70, %p71
      %s74 = sadd.s32 %s73, 1
      %p77 = scmp.eq.s32.totalorder %s13, 1
      %p78 = scmp.ne.s32.totalorder %s73, %s75
      %p79 = scmp.eq.s32.totalorder %s13, 0
      %p80 = por %p78, %p79
      %p81 = scmp.ne.s32.totalorder %s73, %s75
      %p82 = scmp.eq.s32.totalorder %s18, 1
      %p83 = por %p81, %p82
      %p84 = scmp.ne.s32.totalorder %s75, %s76
      %p85 = scmp.eq.s32.totalorder %s18, 0
      %p86 = por %p84, %p85
      %p87 = scmp.ne.s32.totalorder %s75, %s76
      %p88 = scmp.eq.s32.totalorder %s19, 1
      %p89 = por %p87, %p88
      %p91 = scmp.ne.s32.totalorder %s76, %s90
      %p92 = scmp.eq.s32.totalorder %s19, 0
      %p93 = por %p91, %p92
      %s95 = sadd.s32 %s94, 1
      %p98 = scmp.eq.s32.totalorder %s13, 1
      %p99 = scmp.ne.s32.totalorder %s94, %s96
      %p100 = scmp.eq.s32.totalorder %s13, 0
      %p101 = por %p99, %p100
      %p102 = scmp.ne.s32.totalorder %s94, %s96
      %p103 = scmp.eq.s32.totalorder %s18, 1
      %p104 = por %p102, %p103
      %p105 = scmp.ne.s32.totalorder %s96, %s97
      %p106 = scmp.eq.s32.totalorder %s18, 0
      %p107 = por %p105, %p106
      %p108 = scmp.ne.s32.totalorder %s96, %s97
      %p109 = scmp.eq.s32.totalorder %s19, 1
      %p110 = por %p108, %p109
      %p112 = scmp.ne.s32.totalorder %s97, %s111
      %p113 = scmp.eq.s32.totalorder %s19, 0
      %p114 = por %p112, %p113
      %s115 = ssub.s32 %s13, %s20
      %p116 = scmp.eq.s32.totalorder %s115, 0
      %s118 = sadd.s32 %s117, 1
      %s119 = scalar_select %p116, %s117, %s118
      %p122 = pneg %p116
      %p123 = scmp.eq.s32.totalorder %s13, 1
      %p124 = por %p122, %p123
      %p125 = scmp.ne.s32.totalorder %s117, %s120
      %p126 = scmp.eq.s32.totalorder %s13, 0
      %p127 = por %p125, %p126
      %p128 = scmp.ne.s32.totalorder %s117, %s120
      %p129 = scmp.eq.s32.totalorder %s18, 1
      %p130 = por %p128, %p129
      %p131 = scmp.ne.s32.totalorder %s120, %s121
      %p132 = scmp.eq.s32.totalorder %s18, 0
      %p133 = por %p131, %p132
      %p134 = scmp.ne.s32.totalorder %s120, %s121
      %p135 = scmp.eq.s32.totalorder %s19, 1
      %p136 = por %p134, %p135
      %p138 = scmp.ne.s32.totalorder %s121, %s137
      %p139 = scmp.eq.s32.totalorder %s19, 0
      %p140 = por %p138, %p139
      %p141 = scmp.le.s32.totalorder 1, %s13
      %p142 = scmp.lt.s32.totalorder %s13, 3
      %p143 = pnand %p141, %p142
      %p144 = pneg %p143
      // Predicated region
      $region9: #{tpu_custom_call.1} parent=5 // pred_check
        _
      $region10: #{tpu_custom_call.1} parent=5 // pred_check_branch
        %146 = sbr.rel (%p143) target = $region12
      $region11: #{tpu_custom_call.1} parent=5 // pred_region
        %s147 = ssub.s32 %s13, 1
        // Predicated region
        $region13: #{tpu_custom_call.1} parent=11 // pred_check
          %p148 = pneg %p86
        $region14: #{tpu_custom_call.1} parent=11 // pred_check_branch
          %150 = sbr.rel (%p148) target = $region16
        $region15: #{tpu_custom_call.1} parent=11 // pred_region
          _
        $region16: #{tpu_custom_call.1} parent=11 // pred_fallthru
          _
        // Predicated region
        $region17: #{tpu_custom_call.1} parent=11 // pred_check
          %p151 = pneg %p107
        $region18: #{tpu_custom_call.1} parent=11 // pred_check_branch
          %153 = sbr.rel (%p151) target = $region20
        $region19: #{tpu_custom_call.1} parent=11 // pred_region
          _
        $region20: #{tpu_custom_call.1} parent=11 // pred_fallthru
          _
      $region12: #{tpu_custom_call.1} parent=5 // pred_fallthru
        _
      %p154 = scmp.lt.s32.totalorder %s13, 2
      // Predicated region
      $region21: #{tpu_custom_call.1} parent=5 // pred_check
        %p155 = pneg %p154
      $region22: #{tpu_custom_call.1} parent=5 // pred_check_branch
        %157 = sbr.rel (%p155) target = $region24
      $region23: #{tpu_custom_call.1} parent=5 // pred_region
        // Predicated region
        $region25: #{tpu_custom_call.1} parent=23 // pred_check
          %p158 = pneg %p33
        $region26: #{tpu_custom_call.1} parent=23 // pred_check_branch
          %160 = sbr.rel (%p158) target = $region28
        $region27: #{tpu_custom_call.1} parent=23 // pred_region
          %s161 = sand.u32 %s23, 1
          %s162 = sand.u32 %s23, 1
          %s163 = smul.addr %s162, 48
          %s164 = scalar_lea.vmem [#allocation2], %s163
          %s165 = smul.u32 3, %s13
          %s166 = smul.addr %s165, 8
          %s167 = scalar_lea.vmem %s0, %s166
          // Predicated region
          $region29: #{tpu_custom_call.1} parent=27 // pred_check
            _
          $region30: #{tpu_custom_call.1} parent=27 // pred_check_branch
            %169 = sbr.rel (0) target = $region32
          $region31: #{tpu_custom_call.1} parent=27 // pred_region
            // Predicated region
            $region33: #{tpu_custom_call.1} parent=31 // pred_check
              _
            $region34: #{tpu_custom_call.1} parent=31 // pred_check_branch
              %171 = sbr.rel (0) target = $region36
            $region35: #{tpu_custom_call.1} parent=31 // pred_region
              loop: start=0, step=1, limit=1
              $region37: #{tpu_custom_call.1} parent=35 // loop_pre_header
                _
              $region38: #{tpu_custom_call.1} parent=35 // loop_header
                %s173 = sphi 0, %s177
                %p174 = scmp.ge.s32.totalorder %s173, 1
                %s178 = sphi %s167, %s167
                %s179 = sphi %s164, %s164
              $region39: #{tpu_custom_call.1} parent=35 // loop_header_branch
                %176 = sbr.rel (%p174) target = $region43
              $region40: #{tpu_custom_call.1} parent=35 // loop_body
                %v180 = vld [vmem:[%s178] sm:$0xff]
                %181 = vst [vmem:[%s179] sm:$0xff] %v180
                %v182 = vld [vmem:[%s178 + $0x8] sm:$0xff]
                %183 = vst [vmem:[%s179 + $0x8] sm:$0xff] %v182
                %v184 = vld [vmem:[%s178 + $0x10] sm:$0xff]
                %185 = vst [vmem:[%s179 + $0x10] sm:$0xff] %v184
                %v186 = vld [vmem:[%s178 + $0x30] sm:$0xff]
                %187 = vst [vmem:[%s179 + $0x18] sm:$0xff] %v186
                %v188 = vld [vmem:[%s178 + $0x38] sm:$0xff]
                %189 = vst [vmem:[%s179 + $0x20] sm:$0xff] %v188
                %v190 = vld [vmem:[%s178 + $0x40] sm:$0xff]
                %191 = vst [vmem:[%s179 + $0x28] sm:$0xff] %v190
              $region41: #{tpu_custom_call.1} parent=35 // loop_footer
                %s177 = sadd.s32 1, %s173
              $region42: #{tpu_custom_call.1} parent=35 // loop_footer_branch
                %172 = sbr.rel target = $region38
              $region43: #{tpu_custom_call.1} parent=35 // loop_exit
                _
            $region36: #{tpu_custom_call.1} parent=31 // pred_fallthru
              _
            // Predicated region
            $region44: #{tpu_custom_call.1} parent=31 // pred_check
              _
            $region45: #{tpu_custom_call.1} parent=31 // pred_check_branch
              %193 = sbr.rel target = $region47
            $region46: #{tpu_custom_call.1} parent=31 // pred_region
              _
            $region47: #{tpu_custom_call.1} parent=31 // pred_fallthru
              _
          $region32: #{tpu_custom_call.1} parent=27 // pred_fallthru
            _
          %194 = vnop
        $region28: #{tpu_custom_call.1} parent=23 // pred_fallthru
          _
        // Predicated region
        $region48: #{tpu_custom_call.1} parent=23 // pred_check
          %p195 = pneg %p59
        $region49: #{tpu_custom_call.1} parent=23 // pred_check_branch
          %197 = sbr.rel (%p195) target = $region51
        $region50: #{tpu_custom_call.1} parent=23 // pred_region
          %s198 = smul.u32 3, %s13
          %p199 = scmp.lt.s32.totalorder %s198, 5
          %s200 = scalar_select %p199, %s198, 5
          %s201 = smul.addr %s200, 8
          %s202 = scalar_lea.vmem %s1, %s201
          %s203 = smul.u32 3, %s13
        $region51: #{tpu_custom_call.1} parent=23 // pred_fallthru
          _
      $region24: #{tpu_custom_call.1} parent=5 // pred_fallthru
        _
      %p204 = scmp.le.s32.totalorder 1, %s13
      %p205 = scmp.lt.s32.totalorder %s13, 3
      %p206 = pnand %p204, %p205
      %p207 = pneg %p206
      // Predicated region
      $region52: #{tpu_custom_call.1} parent=5 // pred_check
        _
      $region53: #{tpu_custom_call.1} parent=5 // pred_check_branch
        %209 = sbr.rel (%p206) target = $region55
      $region54: #{tpu_custom_call.1} parent=5 // pred_region
        %s210 = ssub.s32 %s13, 1
        %s211 = sand.u32 %s26, 1
        %s212 = sand.u32 %s26, 1
        %s213 = smul.addr %s212, 48
        %s214 = scalar_lea.vmem [#allocation2], %s213
        // Predicated region
        $region56: #{tpu_custom_call.1} parent=54 // pred_check
          %p215 = pneg %p39
        $region57: #{tpu_custom_call.1} parent=54 // pred_check_branch
          %217 = sbr.rel (%p215) target = $region59
        $region58: #{tpu_custom_call.1} parent=54 // pred_region
          _
        $region59: #{tpu_custom_call.1} parent=54 // pred_fallthru
          _
        %s218 = sand.u32 %s26, 1
        %s219 = sand.u32 %s26, 1
        %s220 = smul.addr %s219, 48
        %s221 = scalar_lea.vmem [#allocation2], %s220
        %p222 = pneg %p39
        %p223 = pneg %p36
        %s224 = smul.u32 3, %s18
        %p225 = scmp.lt.s32.totalorder %s224, 5
        %s226 = scalar_select %p225, %s224, 5
        %s227 = smul.addr %s226, 8
        %s228 = scalar_lea.vmem %s1, %s227
        %p229 = pneg %p65
        %p230 = pneg %p62
        %p231 = pneg %p86
        %p232 = pneg %p83
        %p233 = pneg %p107
        %p234 = pneg %p104
        %p235 = pneg %p133
        %p236 = pneg %p130
        %s237 = sand.u32 %s120, 1
        %s238 = scalar_lea.sflag [#allocation4], %s237
        %s239 = sand.u32 %s120, 1
        %s240 = smul.addr %s239, 12
        %s241 = scalar_lea.vmem [#allocation3], %s240
        %s242 = smul.u32 3, %s18
        %s243 = smul.u32 3, %s18
        %p244 = scmp.lt.s32.totalorder %s243, 5
        %s245 = scalar_select %p244, %s243, 5
        %s246 = smul.addr %s245, 8
        %s247 = scalar_lea.vmem %s1, %s246
        %s248 = smul.u32 3, %s18
        %s249 = smul.u32 3, %s18
        %v250 = vld [vmem:[%s2] sm:$0xff]
        %v251 = vld [vmem:[%s2 + $0x8] sm:$0xff]
        %v252 = vld [vmem:[%s2 + $0x10] sm:$0xff]
        %v253 = vld [vmem:[%s2 + $0x18] sm:$0xff]
        %v254 = vld [vmem:[%s2 + $0x20] sm:$0xff]
        %v255 = vld [vmem:[%s2 + $0x28] sm:$0xff]
        %v256 = vld [vmem:[%s2 + $0x30] sm:$0xff]
        %v257 = vld [vmem:[%s2 + $0x38] sm:$0xff]
        %v258 = vld [vmem:[%s2 + $0x40] sm:$0xff]
        %v259 = vld [vmem:[%s2 + $0x48] sm:$0xff]
        %v260 = vld [vmem:[%s2 + $0x50] sm:$0xff]
        %v261 = vld [vmem:[%s2 + $0x58] sm:$0xff]
        %v262 = vld [vmem:[%s2 + $0x60] sm:$0xf]
        %v263 = vld [vmem:[%s3] sm:$0xff]
        %v264 = vld [vmem:[%s3 + $0x8] sm:$0xff]
        %v265 = vld [vmem:[%s3 + $0x10] sm:$0xff]
        %v266 = vld [vmem:[%s3 + $0x18] sm:$0xff]
        %v267 = vld [vmem:[%s3 + $0x20] sm:$0xff]
        %v268 = vld [vmem:[%s3 + $0x28] sm:$0xff]
        %v269 = vld [vmem:[%s3 + $0x30] sm:$0xff]
        %v270 = vld [vmem:[%s3 + $0x38] sm:$0xff]
        %v271 = vld [vmem:[%s3 + $0x40] sm:$0xff]
        %v272 = vld [vmem:[%s3 + $0x48] sm:$0xff]
        %v273 = vld [vmem:[%s3 + $0x50] sm:$0xff]
        %v274 = vld [vmem:[%s3 + $0x58] sm:$0xff]
        %v275 = vld [vmem:[%s3 + $0x60] sm:$0xf]
        %v276 = vld [vmem:[%s214] sm:$0xff]
        %v277 = vld [vmem:[%s214 + $0x8] sm:$0xff]
        %v278 = vld [vmem:[%s214 + $0x10] sm:$0xff]
        %v279 = vld [vmem:[%s214 + $0x18] sm:$0xff]
        %v280 = vld [vmem:[%s214 + $0x20] sm:$0xff]
        %v281 = vld [vmem:[%s214 + $0x28] sm:$0xff]
        %v282 = vld [vmem:[%s247] sm:$0xff]
        %v283 = vld [vmem:[%s247 + $0x8] sm:$0xff]
        %v284 = vld [vmem:[%s247 + $0x10] sm:$0xff]
        %286 = vset.pattern.permute.xlu0 0
        %287 = vperm.xlu0 %286, %v263
        %v288 = vpop.permute.xlu0 %287
        %291 = vset.pattern.permute.xlu0 0
        %292 = vperm.xlu0 %291, %v264
        %v293 = vpop.permute.xlu0 %292
        %296 = vset.pattern.permute.xlu0 0
        %297 = vperm.xlu0 %296, %v265
        %v298 = vpop.permute.xlu0 %297
        %301 = vset.pattern.permute.xlu0 0
        %302 = vperm.xlu0 %301, %v266
        %v303 = vpop.permute.xlu0 %302
        %vm305 = vcmask 130048
        %v307 = vsel %vm305, %v250, 0
        %v310 = vsel %vm305, %v251, 0
        %v313 = vsel %vm305, %v252, 0
        %v316 = vsel %vm305, %v253, 0
        %318 = vmatprep.subr.mxu0 %v277
        %319 = vmatpush1.msra.mxu0 %v276
        %320 = vmatprep.subr.mxu0 %v280
        %321 = vmatpush1.msra.mxu0 %v279
        %322 = vmatprep.subr.mxu0 0.0
        %323 = vmatpush1.msra.mxu0 0.0
        %324 = vmatprep.subr.mxu0 0.0
        %325 = vmatpush1.msra.mxu0 0.0
        %326 = vmatprep.subr.mxu0 0.0
        %327 = vmatpush1.msra.mxu0 0.0
        %328 = vmatprep.subr.mxu0 0.0
        %329 = vmatpush1.msra.mxu0 0.0
        %330 = vmatprep.subr.mxu0 0.0
        %331 = vmatpush1.msra.mxu0 0.0
        %332 = vmatprep.subr.mxu0 0.0
        %333 = vmatpush1.msra.mxu0 0.0
        %334 = vmatprep.subr.mxu0 0.0
        %335 = vmatpush1.msra.mxu0 0.0
        %336 = vmatprep.subr.mxu0 0.0
        %337 = vmatpush1.msra.mxu0 0.0
        %338 = vmatprep.subr.mxu0 0.0
        %339 = vmatpush1.msra.mxu0 0.0
        %340 = vmatprep.subr.mxu0 0.0
        %341 = vmatpush1.msra.mxu0 0.0
        %342 = vmatprep.subr.mxu0 0.0
        %343 = vmatpush1.msra.mxu0 0.0
        %344 = vmatprep.subr.mxu0 0.0
        %345 = vmatpush1.msra.mxu0 0.0
        %346 = vmatprep.subr.mxu0 0.0
        %347 = vmatpush1.msra.mxu0 0.0
        %348 = vmatprep.subr.mxu0 0.0
        %349 = vmatpush1.msra.mxu0 0.0
        %350 = vmatprep.subr.mxu0 0.0
        %351 = vmatpush1.msra.mxu0 0.0
        %352 = vmatprep.subr.mxu0 0.0
        %353 = vmatpush1.msra.mxu0 0.0
        %354 = vmatprep.subr.mxu0 0.0
        %355 = vmatpush1.msra.mxu0 0.0
        %356 = vmatprep.subr.mxu0 0.0
        %357 = vmatpush1.msra.mxu0 0.0
        %358 = vmatprep.subr.mxu0 0.0
        %359 = vmatpush1.msra.mxu0 0.0
        %360 = vmatprep.subr.mxu0 0.0
        %361 = vmatpush1.msra.mxu0 0.0
        %362 = vmatprep.subr.mxu0 0.0
        %363 = vmatpush1.msra.mxu0 0.0
        %364 = vmatprep.subr.mxu0 0.0
        %365 = vmatpush1.msra.mxu0 0.0
        %366 = vmatprep.subr.mxu0 0.0
        %367 = vmatpush1.msra.mxu0 0.0
        %368 = vmatprep.subr.mxu0 0.0
        %369 = vmatpush1.msra.mxu0 0.0
        %370 = vmatprep.subr.mxu0 0.0
        %371 = vmatpush1.msra.mxu0 0.0
        %372 = vmatprep.subr.mxu0 0.0
        %373 = vmatpush1.msra.mxu0 0.0
        %374 = vmatprep.subr.mxu0 0.0
        %375 = vmatpush1.msra.mxu0 0.0
        %376 = vmatprep.subr.mxu0 0.0
        %377 = vmatpush1.msra.mxu0 0.0
        %378 = vmatprep.subr.mxu0 0.0
        %379 = vmatpush1.msra.mxu0 0.0
        %380 = vmatprep.subr.mxu0 0.0
        %381 = vmatpush1.msra.mxu0 0.0
        %382 = vmatprep.mubr.f32.mxu0 0.0
        %383 = vmatmul.mubr.f32.gmra.mrb[0].mxu0 %v307
        %v384 = vpop.f32.mrb[0].mxu0
        %v385 = vadd.f32 %v288, %v384
        %v386 = vpop.f32.mrb[0].mxu0
        %v387 = vadd.f32 %v288, %v386
        %388 = vmatprep.mubr.f32.mxu0 0.0
        %389 = vmatmul.mubr.f32.gmra.mrb[0].mxu0 %v310
        %v390 = vpop.f32.mrb[0].mxu0
        %v391 = vadd.f32 %v293, %v390
        %v392 = vpop.f32.mrb[0].mxu0
        %v393 = vadd.f32 %v293, %v392
        %394 = vmatprep.mubr.f32.mxu0 0.0
        %395 = vmatmul.mubr.f32.gmra.mrb[0].mxu0 %v313
        %v396 = vpop.f32.mrb[0].mxu0
        %v397 = vadd.f32 %v298, %v396
        %v398 = vpop.f32.mrb[0].mxu0
        %v399 = vadd.f32 %v298, %v398
        %400 = vmatprep.mubr.f32.mxu0 0.0
        %401 = vmatmul.mubr.f32.gmra.mrb[0].mxu0 %v316
        %v402 = vpop.f32.mrb[0].mxu0
        %v403 = vadd.f32 %v303, %v402
        %v404 = vpop.f32.mrb[0].mxu0
        %v405 = vadd.f32 %v303, %v404
        %406 = vdwg.mxu0
        %407 = vmatprep.subr.mxu0 0.0
        %408 = vmatpush1.msra.mxu0 %v278
        %409 = vmatprep.subr.mxu0 0.0
        %410 = vmatpush1.msra.mxu0 %v281
        %411 = vmatprep.subr.mxu0 0.0
        %412 = vmatpush1.msra.mxu0 0.0
        %413 = vmatprep.subr.mxu0 0.0
        %414 = vmatpush1.msra.mxu0 0.0
        %415 = vmatprep.subr.mxu0 0.0
        %416 = vmatpush1.msra.mxu0 0.0
        %417 = vmatprep.subr.mxu0 0.0
        %418 = vmatpush1.msra.mxu0 0.0
        %419 = vmatprep.subr.mxu0 0.0
        %420 = vmatpush1.msra.mxu0 0.0
        %421 = vmatprep.subr.mxu0 0.0
        %422 = vmatpush1.msra.mxu0 0.0
        %423 = vmatprep.subr.mxu0 0.0
        %424 = vmatpush1.msra.mxu0 0.0
        %425 = vmatprep.subr.mxu0 0.0
        %426 = vmatpush1.msra.mxu0 0.0
        %427 = vmatprep.subr.mxu0 0.0
        %428 = vmatpush1.msra.mxu0 0.0
        %429 = vmatprep.subr.mxu0 0.0
        %430 = vmatpush1.msra.mxu0 0.0
        %431 = vmatprep.subr.mxu0 0.0
        %432 = vmatpush1.msra.mxu0 0.0
        %433 = vmatprep.subr.mxu0 0.0
        %434 = vmatpush1.msra.mxu0 0.0
        %435 = vmatprep.subr.mxu0 0.0
        %436 = vmatpush1.msra.mxu0 0.0
        %437 = vmatprep.subr.mxu0 0.0
        %438 = vmatpush1.msra.mxu0 0.0
        %439 = vmatprep.subr.mxu0 0.0
        %440 = vmatpush1.msra.mxu0 0.0
        %441 = vmatprep.subr.mxu0 0.0
        %442 = vmatpush1.msra.mxu0 0.0
        %443 = vmatprep.subr.mxu0 0.0
        %444 = vmatpush1.msra.mxu0 0.0
        %445 = vmatprep.subr.mxu0 0.0
        %446 = vmatpush1.msra.mxu0 0.0
        %447 = vmatprep.subr.mxu0 0.0
        %448 = vmatpush1.msra.mxu0 0.0
        %449 = vmatprep.subr.mxu0 0.0
        %450 = vmatpush1.msra.mxu0 0.0
        %451 = vmatprep.subr.mxu0 0.0
        %452 = vmatpush1.msra.mxu0 0.0
        %453 = vmatprep.subr.mxu0 0.0
        %454 = vmatpush1.msra.mxu0 0.0
        %455 = vmatprep.subr.mxu0 0.0
        %456 = vmatpush1.msra.mxu0 0.0
        %457 = vmatprep.subr.mxu0 0.0
        %458 = vmatpush1.msra.mxu0 0.0
        %459 = vmatprep.subr.mxu0 0.0
        %460 = vmatpush1.msra.mxu0 0.0
        %461 = vmatprep.subr.mxu0 0.0
        %462 = vmatpush1.msra.mxu0 0.0
        %463 = vmatprep.subr.mxu0 0.0
        %464 = vmatpush1.msra.mxu0 0.0
        %465 = vmatprep.subr.mxu0 0.0
        %466 = vmatpush1.msra.mxu0 0.0
        %467 = vmatprep.subr.mxu0 0.0
        %468 = vmatpush1.msra.mxu0 0.0
        %469 = vmatprep.subr.mxu0 0.0
        %470 = vmatpush1.msra.mxu0 0.0
        %471 = vmatprep.mubr.f32.mxu0 0.0
        %472 = vmatmul.mubr.f32.gmra.mrb[0].mxu0 %v307
        %v473 = vpop.f32.mrb[0].mxu0
        %v474 = vadd.f32 %v288, %v473
        %v475 = vpop.f32.mrb[0].mxu0
        %476 = vmatprep.mubr.f32.mxu0 0.0
        %477 = vmatmul.mubr.f32.gmra.mrb[0].mxu0 %v310
        %v478 = vpop.f32.mrb[0].mxu0
        %v479 = vadd.f32 %v293, %v478
        %v480 = vpop.f32.mrb[0].mxu0
        %481 = vmatprep.mubr.f32.mxu0 0.0
        %482 = vmatmul.mubr.f32.gmra.mrb[0].mxu0 %v313
        %v483 = vpop.f32.mrb[0].mxu0
        %v484 = vadd.f32 %v298, %v483
        %v485 = vpop.f32.mrb[0].mxu0
        %486 = vmatprep.mubr.f32.mxu0 0.0
        %487 = vmatmul.mubr.f32.gmra.mrb[0].mxu0 %v316
        %v488 = vpop.f32.mrb[0].mxu0
        %v489 = vadd.f32 %v303, %v488
        %v490 = vpop.f32.mrb[0].mxu0
        %491 = vdwg.mxu0
        %v492 = vmax.f32 %v385, 0.0
        %v493 = vmax.f32 %v387, 0.0
        %v494 = vmax.f32 %v474, 0.0
        %v495 = vmax.f32 %v391, 0.0
        %v496 = vmax.f32 %v393, 0.0
        %v497 = vmax.f32 %v479, 0.0
        %v498 = vmax.f32 %v397, 0.0
        %v499 = vmax.f32 %v399, 0.0
        %v500 = vmax.f32 %v484, 0.0
        %v501 = vmax.f32 %v403, 0.0
        %v502 = vmax.f32 %v405, 0.0
        %v503 = vmax.f32 %v489, 0.0
        %505 = vset.pattern.permute.xlu0 0
        %506 = vperm.xlu0 %505, %v267
        %v507 = vpop.permute.xlu0 %506
        %510 = vset.pattern.permute.xlu0 0
        %511 = vperm.xlu0 %510, %v268
        %v512 = vpop.permute.xlu0 %511
        %515 = vset.pattern.permute.xlu0 0
        %516 = vperm.xlu0 %515, %v269
        %v517 = vpop.permute.xlu0 %516
        %520 = vset.pattern.permute.xlu0 0
        %521 = vperm.xlu0 %520, %v270
        %v522 = vpop.permute.xlu0 %521
        %vm524 = vcmask 261120
        %v526 = vsel %vm524, %v254, 0
        %v529 = vsel %vm524, %v255, 0
        %v532 = vsel %vm524, %v256, 0
        %v535 = vsel %vm524, %v257, 0
        %537 = vmatprep.subr.mxu0 %v493
        %538 = vmatpush1.msra.mxu0 %v492
        %539 = vmatprep.subr.mxu0 %v496
        %540 = vmatpush1.msra.mxu0 %v495
        %541 = vmatprep.subr.mxu0 %v499
        %542 = vmatpush1.msra.mxu0 %v498
        %543 = vmatprep.subr.mxu0 %v502
        %544 = vmatpush1.msra.mxu0 %v501
        %545 = vmatprep.subr.mxu0 0.0
        %546 = vmatpush1.msra.mxu0 0.0
        %547 = vmatprep.subr.mxu0 0.0
        %548 = vmatpush1.msra.mxu0 0.0
        %549 = vmatprep.subr.mxu0 0.0
        %550 = vmatpush1.msra.mxu0 0.0
        %551 = vmatprep.subr.mxu0 0.0
        %552 = vmatpush1.msra.mxu0 0.0
        %553 = vmatprep.subr.mxu0 0.0
        %554 = vmatpush1.msra.mxu0 0.0
        %555 = vmatprep.subr.mxu0 0.0
        %556 = vmatpush1.msra.mxu0 0.0
        %557 = vmatprep.subr.mxu0 0.0
        %558 = vmatpush1.msra.mxu0 0.0
        %559 = vmatprep.subr.mxu0 0.0
        %560 = vmatpush1.msra.mxu0 0.0
        %561 = vmatprep.subr.mxu0 0.0
        %562 = vmatpush1.msra.mxu0 0.0
        %563 = vmatprep.subr.mxu0 0.0
        %564 = vmatpush1.msra.mxu0 0.0
        %565 = vmatprep.subr.mxu0 0.0
        %566 = vmatpush1.msra.mxu0 0.0
        %567 = vmatprep.subr.mxu0 0.0
        %568 = vmatpush1.msra.mxu0 0.0
        %569 = vmatprep.subr.mxu0 0.0
        %570 = vmatpush1.msra.mxu0 0.0
        %571 = vmatprep.subr.mxu0 0.0
        %572 = vmatpush1.msra.mxu0 0.0
        %573 = vmatprep.subr.mxu0 0.0
        %574 = vmatpush1.msra.mxu0 0.0
        %575 = vmatprep.subr.mxu0 0.0
        %576 = vmatpush1.msra.mxu0 0.0
        %577 = vmatprep.subr.mxu0 0.0
        %578 = vmatpush1.msra.mxu0 0.0
        %579 = vmatprep.subr.mxu0 0.0
        %580 = vmatpush1.msra.mxu0 0.0
        %581 = vmatprep.subr.mxu0 0.0
        %582 = vmatpush1.msra.mxu0 0.0
        %583 = vmatprep.subr.mxu0 0.0
        %584 = vmatpush1.msra.mxu0 0.0
        %585 = vmatprep.subr.mxu0 0.0
        %586 = vmatpush1.msra.mxu0 0.0
        %587 = vmatprep.subr.mxu0 0.0
        %588 = vmatpush1.msra.mxu0 0.0
        %589 = vmatprep.subr.mxu0 0.0
        %590 = vmatpush1.msra.mxu0 0.0
        %591 = vmatprep.subr.mxu0 0.0
        %592 = vmatpush1.msra.mxu0 0.0
        %593 = vmatprep.subr.mxu0 0.0
        %594 = vmatpush1.msra.mxu0 0.0
        %595 = vmatprep.subr.mxu0 0.0
        %596 = vmatpush1.msra.mxu0 0.0
        %597 = vmatprep.subr.mxu0 0.0
        %598 = vmatpush1.msra.mxu0 0.0
        %599 = vmatprep.subr.mxu0 0.0
        %600 = vmatpush1.msra.mxu0 0.0
        %601 = vmatprep.mubr.f32.mxu0 0.0
        %602 = vmatmul.mubr.f32.gmra.mrb[0].mxu0 %v526
        %v603 = vpop.f32.mrb[0].mxu0
        %v604 = vadd.f32 %v507, %v603
        %v605 = vpop.f32.mrb[0].mxu0
        %v606 = vadd.f32 %v507, %v605
        %607 = vmatprep.mubr.f32.mxu0 0.0
        %608 = vmatmul.mubr.f32.gmra.mrb[0].mxu0 %v529
        %v609 = vpop.f32.mrb[0].mxu0
        %v610 = vadd.f32 %v512, %v609
        %v611 = vpop.f32.mrb[0].mxu0
        %v612 = vadd.f32 %v512, %v611
        %613 = vmatprep.mubr.f32.mxu0 0.0
        %614 = vmatmul.mubr.f32.gmra.mrb[0].mxu0 %v532
        %v615 = vpop.f32.mrb[0].mxu0
        %v616 = vadd.f32 %v517, %v615
        %v617 = vpop.f32.mrb[0].mxu0
        %v618 = vadd.f32 %v517, %v617
        %619 = vmatprep.mubr.f32.mxu0 0.0
        %620 = vmatmul.mubr.f32.gmra.mrb[0].mxu0 %v535
        %v621 = vpop.f32.mrb[0].mxu0
        %v622 = vadd.f32 %v522, %v621
        %v623 = vpop.f32.mrb[0].mxu0
        %v624 = vadd.f32 %v522, %v623
        %625 = vdwg.mxu0
        %626 = vmatprep.subr.mxu0 0.0
        %627 = vmatpush1.msra.mxu0 %v494
        %628 = vmatprep.subr.mxu0 0.0
        %629 = vmatpush1.msra.mxu0 %v497
        %630 = vmatprep.subr.mxu0 0.0
        %631 = vmatpush1.msra.mxu0 %v500
        %632 = vmatprep.subr.mxu0 0.0
        %633 = vmatpush1.msra.mxu0 %v503
        %634 = vmatprep.subr.mxu0 0.0
        %635 = vmatpush1.msra.mxu0 0.0
        %636 = vmatprep.subr.mxu0 0.0
        %637 = vmatpush1.msra.mxu0 0.0
        %638 = vmatprep.subr.mxu0 0.0
        %639 = vmatpush1.msra.mxu0 0.0
        %640 = vmatprep.subr.mxu0 0.0
        %641 = vmatpush1.msra.mxu0 0.0
        %642 = vmatprep.subr.mxu0 0.0
        %643 = vmatpush1.msra.mxu0 0.0
        %644 = vmatprep.subr.mxu0 0.0
        %645 = vmatpush1.msra.mxu0 0.0
        %646 = vmatprep.subr.mxu0 0.0
        %647 = vmatpush1.msra.mxu0 0.0
        %648 = vmatprep.subr.mxu0 0.0
        %649 = vmatpush1.msra.mxu0 0.0
        %650 = vmatprep.subr.mxu0 0.0
        %651 = vmatpush1.msra.mxu0 0.0
        %652 = vmatprep.subr.mxu0 0.0
        %653 = vmatpush1.msra.mxu0 0.0
        %654 = vmatprep.subr.mxu0 0.0
        %655 = vmatpush1.msra.mxu0 0.0
        %656 = vmatprep.subr.mxu0 0.0
        %657 = vmatpush1.msra.mxu0 0.0
        %658 = vmatprep.subr.mxu0 0.0
        %659 = vmatpush1.msra.mxu0 0.0
        %660 = vmatprep.subr.mxu0 0.0
        %661 = vmatpush1.msra.mxu0 0.0
        %662 = vmatprep.subr.mxu0 0.0
        %663 = vmatpush1.msra.mxu0 0.0
        %664 = vmatprep.subr.mxu0 0.0
        %665 = vmatpush1.msra.mxu0 0.0
        %666 = vmatprep.subr.mxu0 0.0
        %667 = vmatpush1.msra.mxu0 0.0
        %668 = vmatprep.subr.mxu0 0.0
        %669 = vmatpush1.msra.mxu0 0.0
        %670 = vmatprep.subr.mxu0 0.0
        %671 = vmatpush1.msra.mxu0 0.0
        %672 = vmatprep.subr.mxu0 0.0
        %673 = vmatpush1.msra.mxu0 0.0
        %674 = vmatprep.subr.mxu0 0.0
        %675 = vmatpush1.msra.mxu0 0.0
        %676 = vmatprep.subr.mxu0 0.0
        %677 = vmatpush1.msra.mxu0 0.0
        %678 = vmatprep.subr.mxu0 0.0
        %679 = vmatpush1.msra.mxu0 0.0
        %680 = vmatprep.subr.mxu0 0.0
        %681 = vmatpush1.msra.mxu0 0.0
        %682 = vmatprep.subr.mxu0 0.0
        %683 = vmatpush1.msra.mxu0 0.0
        %684 = vmatprep.subr.mxu0 0.0
        %685 = vmatpush1.msra.mxu0 0.0
        %686 = vmatprep.subr.mxu0 0.0
        %687 = vmatpush1.msra.mxu0 0.0
        %688 = vmatprep.subr.mxu0 0.0
        %689 = vmatpush1.msra.mxu0 0.0
        %690 = vmatprep.mubr.f32.mxu0 0.0
        %691 = vmatmul.mubr.f32.gmra.mrb[0].mxu0 %v526
        %v692 = vpop.f32.mrb[0].mxu0
        %v693 = vadd.f32 %v507, %v692
        %v694 = vpop.f32.mrb[0].mxu0
        %695 = vmatprep.mubr.f32.mxu0 0.0
        %696 = vmatmul.mubr.f32.gmra.mrb[0].mxu0 %v529
        %v697 = vpop.f32.mrb[0].mxu0
        %v698 = vadd.f32 %v512, %v697
        %v699 = vpop.f32.mrb[0].mxu0
        %700 = vmatprep.mubr.f32.mxu0 0.0
        %701 = vmatmul.mubr.f32.gmra.mrb[0].mxu0 %v532
        %v702 = vpop.f32.mrb[0].mxu0
        %v703 = vadd.f32 %v517, %v702
        %v704 = vpop.f32.mrb[0].mxu0
        %705 = vmatprep.mubr.f32.mxu0 0.0
        %706 = vmatmul.mubr.f32.gmra.mrb[0].mxu0 %v535
        %v707 = vpop.f32.mrb[0].mxu0
        %v708 = vadd.f32 %v522, %v707
        %v709 = vpop.f32.mrb[0].mxu0
        %710 = vdwg.mxu0
        %v711 = vmax.f32 %v604, 0.0
        %v712 = vmax.f32 %v606, 0.0
        %v713 = vmax.f32 %v693, 0.0
        %v714 = vmax.f32 %v610, 0.0
        %v715 = vmax.f32 %v612, 0.0
        %v716 = vmax.f32 %v698, 0.0
        %v717 = vmax.f32 %v616, 0.0
        %v718 = vmax.f32 %v618, 0.0
        %v719 = vmax.f32 %v703, 0.0
        %v720 = vmax.f32 %v622, 0.0
        %v721 = vmax.f32 %v624, 0.0
        %v722 = vmax.f32 %v708, 0.0
        %727 = vrot.lane.b32.xlu0 %v258, 96
        %v728 = vpop.permute.xlu0 %727
        %729 = vrot.lane.b32.xlu0 %v259, 96
        %v730 = vpop.permute.xlu0 %729
        %731 = vrot.lane.b32.xlu0 %v260, 96
        %v732 = vpop.permute.xlu0 %731
        %733 = vrot.lane.b32.xlu0 %v261, 96
        %v734 = vpop.permute.xlu0 %733
        %vm735 = vcmask 64512
        %v736 = vsel %vm735, %v728, 0
        %v738 = vsel %vm735, %v730, 0
        %v740 = vsel %vm735, %v732, 0
        %v742 = vsel %vm735, %v734, 0
        %744 = vmatprep.subr.mxu0 %v283
        %745 = vmatpush1.msra.mxu0 %v282
        %746 = vmatprep.subr.mxu0 0.0
        %747 = vmatpush1.msra.mxu0 0.0
        %748 = vmatprep.subr.mxu0 0.0
        %749 = vmatpush1.msra.mxu0 0.0
        %750 = vmatprep.subr.mxu0 0.0
        %751 = vmatpush1.msra.mxu0 0.0
        %752 = vmatprep.subr.mxu0 0.0
        %753 = vmatpush1.msra.mxu0 0.0
        %754 = vmatprep.subr.mxu0 0.0
        %755 = vmatpush1.msra.mxu0 0.0
        %756 = vmatprep.subr.mxu0 0.0
        %757 = vmatpush1.msra.mxu0 0.0
        %758 = vmatprep.subr.mxu0 0.0
        %759 = vmatpush1.msra.mxu0 0.0
        %760 = vmatprep.subr.mxu0 0.0
        %761 = vmatpush1.msra.mxu0 0.0
        %762 = vmatprep.subr.mxu0 0.0
        %763 = vmatpush1.msra.mxu0 0.0
        %764 = vmatprep.subr.mxu0 0.0
        %765 = vmatpush1.msra.mxu0 0.0
        %766 = vmatprep.subr.mxu0 0.0
        %767 = vmatpush1.msra.mxu0 0.0
        %768 = vmatprep.subr.mxu0 0.0
        %769 = vmatpush1.msra.mxu0 0.0
        %770 = vmatprep.subr.mxu0 0.0
        %771 = vmatpush1.msra.mxu0 0.0
        %772 = vmatprep.subr.mxu0 0.0
        %773 = vmatpush1.msra.mxu0 0.0
        %774 = vmatprep.subr.mxu0 0.0
        %775 = vmatpush1.msra.mxu0 0.0
        %776 = vmatprep.subr.mxu0 0.0
        %777 = vmatpush1.msra.mxu0 0.0
        %778 = vmatprep.subr.mxu0 0.0
        %779 = vmatpush1.msra.mxu0 0.0
        %780 = vmatprep.subr.mxu0 0.0
        %781 = vmatpush1.msra.mxu0 0.0
        %782 = vmatprep.subr.mxu0 0.0
        %783 = vmatpush1.msra.mxu0 0.0
        %784 = vmatprep.subr.mxu0 0.0
        %785 = vmatpush1.msra.mxu0 0.0
        %786 = vmatprep.subr.mxu0 0.0
        %787 = vmatpush1.msra.mxu0 0.0
        %788 = vmatprep.subr.mxu0 0.0
        %789 = vmatpush1.msra.mxu0 0.0
        %790 = vmatprep.subr.mxu0 0.0
        %791 = vmatpush1.msra.mxu0 0.0
        %792 = vmatprep.subr.mxu0 0.0
        %793 = vmatpush1.msra.mxu0 0.0
        %794 = vmatprep.subr.mxu0 0.0
        %795 = vmatpush1.msra.mxu0 0.0
        %796 = vmatprep.subr.mxu0 0.0
        %797 = vmatpush1.msra.mxu0 0.0
        %798 = vmatprep.subr.mxu0 0.0
        %799 = vmatpush1.msra.mxu0 0.0
        %800 = vmatprep.subr.mxu0 0.0
        %801 = vmatpush1.msra.mxu0 0.0
        %802 = vmatprep.subr.mxu0 0.0
        %803 = vmatpush1.msra.mxu0 0.0
        %804 = vmatprep.subr.mxu0 0.0
        %805 = vmatpush1.msra.mxu0 0.0
        %806 = vmatprep.subr.mxu0 0.0
        %807 = vmatpush1.msra.mxu0 0.0
        %808 = vmatprep.mubr.f32.mxu0 0.0
        %809 = vmatmul.mubr.f32.gmra.mrb[0].mxu0 %v736
        %v810 = vpop.f32.mrb[0].mxu0
        %v811 = vadd.f32 0.0, %v810
        %v812 = vpop.f32.mrb[0].mxu0
        %v813 = vadd.f32 0.0, %v812
        %814 = vmatprep.mubr.f32.mxu0 0.0
        %815 = vmatmul.mubr.f32.gmra.mrb[0].mxu0 %v738
        %v816 = vpop.f32.mrb[0].mxu0
        %v817 = vadd.f32 0.0, %v816
        %v818 = vpop.f32.mrb[0].mxu0
        %v819 = vadd.f32 0.0, %v818
        %820 = vmatprep.mubr.f32.mxu0 0.0
        %821 = vmatmul.mubr.f32.gmra.mrb[0].mxu0 %v740
        %v822 = vpop.f32.mrb[0].mxu0
        %v823 = vadd.f32 0.0, %v822
        %v824 = vpop.f32.mrb[0].mxu0
        %v825 = vadd.f32 0.0, %v824
        %826 = vmatprep.mubr.f32.mxu0 0.0
        %827 = vmatmul.mubr.f32.gmra.mrb[0].mxu0 %v742
        %v828 = vpop.f32.mrb[0].mxu0
        %v829 = vadd.f32 0.0, %v828
        %v830 = vpop.f32.mrb[0].mxu0
        %v831 = vadd.f32 0.0, %v830
        %832 = vdwg.mxu0
        %833 = vmatprep.subr.mxu0 0.0
        %834 = vmatpush1.msra.mxu0 %v284
        %835 = vmatprep.subr.mxu0 0.0
        %836 = vmatpush1.msra.mxu0 0.0
        %837 = vmatprep.subr.mxu0 0.0
        %838 = vmatpush1.msra.mxu0 0.0
        %839 = vmatprep.subr.mxu0 0.0
        %840 = vmatpush1.msra.mxu0 0.0
        %841 = vmatprep.subr.mxu0 0.0
        %842 = vmatpush1.msra.mxu0 0.0
        %843 = vmatprep.subr.mxu0 0.0
        %844 = vmatpush1.msra.mxu0 0.0
        %845 = vmatprep.subr.mxu0 0.0
        %846 = vmatpush1.msra.mxu0 0.0
        %847 = vmatprep.subr.mxu0 0.0
        %848 = vmatpush1.msra.mxu0 0.0
        %849 = vmatprep.subr.mxu0 0.0
        %850 = vmatpush1.msra.mxu0 0.0
        %851 = vmatprep.subr.mxu0 0.0
        %852 = vmatpush1.msra.mxu0 0.0
        %853 = vmatprep.subr.mxu0 0.0
        %854 = vmatpush1.msra.mxu0 0.0
        %855 = vmatprep.subr.mxu0 0.0
        %856 = vmatpush1.msra.mxu0 0.0
        %857 = vmatprep.subr.mxu0 0.0
        %858 = vmatpush1.msra.mxu0 0.0
        %859 = vmatprep.subr.mxu0 0.0
        %860 = vmatpush1.msra.mxu0 0.0
        %861 = vmatprep.subr.mxu0 0.0
        %862 = vmatpush1.msra.mxu0 0.0
        %863 = vmatprep.subr.mxu0 0.0
        %864 = vmatpush1.msra.mxu0 0.0
        %865 = vmatprep.subr.mxu0 0.0
        %866 = vmatpush1.msra.mxu0 0.0
        %867 = vmatprep.subr.mxu0 0.0
        %868 = vmatpush1.msra.mxu0 0.0
        %869 = vmatprep.subr.mxu0 0.0
        %870 = vmatpush1.msra.mxu0 0.0
        %871 = vmatprep.subr.mxu0 0.0
        %872 = vmatpush1.msra.mxu0 0.0
        %873 = vmatprep.subr.mxu0 0.0
        %874 = vmatpush1.msra.mxu0 0.0
        %875 = vmatprep.subr.mxu0 0.0
        %876 = vmatpush1.msra.mxu0 0.0
        %877 = vmatprep.subr.mxu0 0.0
        %878 = vmatpush1.msra.mxu0 0.0
        %879 = vmatprep.subr.mxu0 0.0
        %880 = vmatpush1.msra.mxu0 0.0
        %881 = vmatprep.subr.mxu0 0.0
        %882 = vmatpush1.msra.mxu0 0.0
        %883 = vmatprep.subr.mxu0 0.0
        %884 = vmatpush1.msra.mxu0 0.0
        %885 = vmatprep.subr.mxu0 0.0
        %886 = vmatpush1.msra.mxu0 0.0
        %887 = vmatprep.subr.mxu0 0.0
        %888 = vmatpush1.msra.mxu0 0.0
        %889 = vmatprep.subr.mxu0 0.0
        %890 = vmatpush1.msra.mxu0 0.0
        %891 = vmatprep.subr.mxu0 0.0
        %892 = vmatpush1.msra.mxu0 0.0
        %893 = vmatprep.subr.mxu0 0.0
        %894 = vmatpush1.msra.mxu0 0.0
        %895 = vmatprep.subr.mxu0 0.0
        %896 = vmatpush1.msra.mxu0 0.0
        %897 = vmatprep.mubr.f32.mxu0 0.0
        %898 = vmatmul.mubr.f32.gmra.mrb[0].mxu0 %v736
        %v899 = vpop.f32.mrb[0].mxu0
        %v900 = vadd.f32 0.0, %v899
        %v901 = vpop.f32.mrb[0].mxu0
        %902 = vmatprep.mubr.f32.mxu0 0.0
        %903 = vmatmul.mubr.f32.gmra.mrb[0].mxu0 %v738
        %v904 = vpop.f32.mrb[0].mxu0
        %v905 = vadd.f32 0.0, %v904
        %v906 = vpop.f32.mrb[0].mxu0
        %907 = vmatprep.mubr.f32.mxu0 0.0
        %908 = vmatmul.mubr.f32.gmra.mrb[0].mxu0 %v740
        %v909 = vpop.f32.mrb[0].mxu0
        %v910 = vadd.f32 0.0, %v909
        %v911 = vpop.f32.mrb[0].mxu0
        %912 = vmatprep.mubr.f32.mxu0 0.0
        %913 = vmatmul.mubr.f32.gmra.mrb[0].mxu0 %v742
        %v914 = vpop.f32.mrb[0].mxu0
        %v915 = vadd.f32 0.0, %v914
        %v916 = vpop.f32.mrb[0].mxu0
        %917 = vdwg.mxu0
        %v918 = vsel %vm524, %v258, 0
        %v920 = vsel %vm524, %v259, 0
        %v922 = vsel %vm524, %v260, 0
        %v924 = vsel %vm524, %v261, 0
        %926 = vmatprep.subr.mxu0 %v712
        %927 = vmatpush1.msra.mxu0 %v711
        %928 = vmatprep.subr.mxu0 %v715
        %929 = vmatpush1.msra.mxu0 %v714
        %930 = vmatprep.subr.mxu0 %v718
        %931 = vmatpush1.msra.mxu0 %v717
        %932 = vmatprep.subr.mxu0 %v721
        %933 = vmatpush1.msra.mxu0 %v720
        %934 = vmatprep.subr.mxu0 0.0
        %935 = vmatpush1.msra.mxu0 0.0
        %936 = vmatprep.subr.mxu0 0.0
        %937 = vmatpush1.msra.mxu0 0.0
        %938 = vmatprep.subr.mxu0 0.0
        %939 = vmatpush1.msra.mxu0 0.0
        %940 = vmatprep.subr.mxu0 0.0
        %941 = vmatpush1.msra.mxu0 0.0
        %942 = vmatprep.subr.mxu0 0.0
        %943 = vmatpush1.msra.mxu0 0.0
        %944 = vmatprep.subr.mxu0 0.0
        %945 = vmatpush1.msra.mxu0 0.0
        %946 = vmatprep.subr.mxu0 0.0
        %947 = vmatpush1.msra.mxu0 0.0
        %948 = vmatprep.subr.mxu0 0.0
        %949 = vmatpush1.msra.mxu0 0.0
        %950 = vmatprep.subr.mxu0 0.0
        %951 = vmatpush1.msra.mxu0 0.0
        %952 = vmatprep.subr.mxu0 0.0
        %953 = vmatpush1.msra.mxu0 0.0
        %954 = vmatprep.subr.mxu0 0.0
        %955 = vmatpush1.msra.mxu0 0.0
        %956 = vmatprep.subr.mxu0 0.0
        %957 = vmatpush1.msra.mxu0 0.0
        %958 = vmatprep.subr.mxu0 0.0
        %959 = vmatpush1.msra.mxu0 0.0
        %960 = vmatprep.subr.mxu0 0.0
        %961 = vmatpush1.msra.mxu0 0.0
        %962 = vmatprep.subr.mxu0 0.0
        %963 = vmatpush1.msra.mxu0 0.0
        %964 = vmatprep.subr.mxu0 0.0
        %965 = vmatpush1.msra.mxu0 0.0
        %966 = vmatprep.subr.mxu0 0.0
        %967 = vmatpush1.msra.mxu0 0.0
        %968 = vmatprep.subr.mxu0 0.0
        %969 = vmatpush1.msra.mxu0 0.0
        %970 = vmatprep.subr.mxu0 0.0
        %971 = vmatpush1.msra.mxu0 0.0
        %972 = vmatprep.subr.mxu0 0.0
        %973 = vmatpush1.msra.mxu0 0.0
        %974 = vmatprep.subr.mxu0 0.0
        %975 = vmatpush1.msra.mxu0 0.0
        %976 = vmatprep.subr.mxu0 0.0
        %977 = vmatpush1.msra.mxu0 0.0
        %978 = vmatprep.subr.mxu0 0.0
        %979 = vmatpush1.msra.mxu0 0.0
        %980 = vmatprep.subr.mxu0 0.0
        %981 = vmatpush1.msra.mxu0 0.0
        %982 = vmatprep.subr.mxu0 0.0
        %983 = vmatpush1.msra.mxu0 0.0
        %984 = vmatprep.subr.mxu0 0.0
        %985 = vmatpush1.msra.mxu0 0.0
        %986 = vmatprep.subr.mxu0 0.0
        %987 = vmatpush1.msra.mxu0 0.0
        %988 = vmatprep.subr.mxu0 0.0
        %989 = vmatpush1.msra.mxu0 0.0
        %990 = vmatprep.mubr.f32.mxu0 0.0
        %991 = vmatmul.mubr.f32.gmra.mrb[0].mxu0 %v918
        %v992 = vpop.f32.mrb[0].mxu0
        %v993 = vadd.f32 %v811, %v992
        %v994 = vpop.f32.mrb[0].mxu0
        %v995 = vadd.f32 %v813, %v994
        %996 = vmatprep.mubr.f32.mxu0 0.0
        %997 = vmatmul.mubr.f32.gmra.mrb[0].mxu0 %v920
        %v998 = vpop.f32.mrb[0].mxu0
        %v999 = vadd.f32 %v817, %v998
        %v1000 = vpop.f32.mrb[0].mxu0
        %v1001 = vadd.f32 %v819, %v1000
        %1002 = vmatprep.mubr.f32.mxu0 0.0
        %1003 = vmatmul.mubr.f32.gmra.mrb[0].mxu0 %v922
        %v1004 = vpop.f32.mrb[0].mxu0
        %v1005 = vadd.f32 %v823, %v1004
        %v1006 = vpop.f32.mrb[0].mxu0
        %v1007 = vadd.f32 %v825, %v1006
        %1008 = vmatprep.mubr.f32.mxu0 0.0
        %1009 = vmatmul.mubr.f32.gmra.mrb[0].mxu0 %v924
        %v1010 = vpop.f32.mrb[0].mxu0
        %v1011 = vadd.f32 %v829, %v1010
        %v1012 = vpop.f32.mrb[0].mxu0
        %v1013 = vadd.f32 %v831, %v1012
        %1014 = vdwg.mxu0
        %1015 = vmatprep.subr.mxu0 0.0
        %1016 = vmatpush1.msra.mxu0 %v713
        %1017 = vmatprep.subr.mxu0 0.0
        %1018 = vmatpush1.msra.mxu0 %v716
        %1019 = vmatprep.subr.mxu0 0.0
        %1020 = vmatpush1.msra.mxu0 %v719
        %1021 = vmatprep.subr.mxu0 0.0
        %1022 = vmatpush1.msra.mxu0 %v722
        %1023 = vmatprep.subr.mxu0 0.0
        %1024 = vmatpush1.msra.mxu0 0.0
        %1025 = vmatprep.subr.mxu0 0.0
        %1026 = vmatpush1.msra.mxu0 0.0
        %1027 = vmatprep.subr.mxu0 0.0
        %1028 = vmatpush1.msra.mxu0 0.0
        %1029 = vmatprep.subr.mxu0 0.0
        %1030 = vmatpush1.msra.mxu0 0.0
        %1031 = vmatprep.subr.mxu0 0.0
        %1032 = vmatpush1.msra.mxu0 0.0
        %1033 = vmatprep.subr.mxu0 0.0
        %1034 = vmatpush1.msra.mxu0 0.0
        %1035 = vmatprep.subr.mxu0 0.0
        %1036 = vmatpush1.msra.mxu0 0.0
        %1037 = vmatprep.subr.mxu0 0.0
        %1038 = vmatpush1.msra.mxu0 0.0
        %1039 = vmatprep.subr.mxu0 0.0
        %1040 = vmatpush1.msra.mxu0 0.0
        %1041 = vmatprep.subr.mxu0 0.0
        %1042 = vmatpush1.msra.mxu0 0.0
        %1043 = vmatprep.subr.mxu0 0.0
        %1044 = vmatpush1.msra.mxu0 0.0
        %1045 = vmatprep.subr.mxu0 0.0
        %1046 = vmatpush1.msra.mxu0 0.0
        %1047 = vmatprep.subr.mxu0 0.0
        %1048 = vmatpush1.msra.mxu0 0.0
        %1049 = vmatprep.subr.mxu0 0.0
        %1050 = vmatpush1.msra.mxu0 0.0
        %1051 = vmatprep.subr.mxu0 0.0
        %1052 = vmatpush1.msra.mxu0 0.0
        %1053 = vmatprep.subr.mxu0 0.0
        %1054 = vmatpush1.msra.mxu0 0.0
        %1055 = vmatprep.subr.mxu0 0.0
        %1056 = vmatpush1.msra.mxu0 0.0
        %1057 = vmatprep.subr.mxu0 0.0
        %1058 = vmatpush1.msra.mxu0 0.0
        %1059 = vmatprep.subr.mxu0 0.0
        %1060 = vmatpush1.msra.mxu0 0.0
        %1061 = vmatprep.subr.mxu0 0.0
        %1062 = vmatpush1.msra.mxu0 0.0
        %1063 = vmatprep.subr.mxu0 0.0
        %1064 = vmatpush1.msra.mxu0 0.0
        %1065 = vmatprep.subr.mxu0 0.0
        %1066 = vmatpush1.msra.mxu0 0.0
        %1067 = vmatprep.subr.mxu0 0.0
        %1068 = vmatpush1.msra.mxu0 0.0
        %1069 = vmatprep.subr.mxu0 0.0
        %1070 = vmatpush1.msra.mxu0 0.0
        %1071 = vmatprep.subr.mxu0 0.0
        %1072 = vmatpush1.msra.mxu0 0.0
        %1073 = vmatprep.subr.mxu0 0.0
        %1074 = vmatpush1.msra.mxu0 0.0
        %1075 = vmatprep.subr.mxu0 0.0
        %1076 = vmatpush1.msra.mxu0 0.0
        %1077 = vmatprep.subr.mxu0 0.0
        %1078 = vmatpush1.msra.mxu0 0.0
        %1079 = vmatprep.mubr.f32.mxu0 0.0
        %1080 = vmatmul.mubr.f32.gmra.mrb[0].mxu0 %v918
        %v1081 = vpop.f32.mrb[0].mxu0
        %v1082 = vadd.f32 %v900, %v1081
        %v1083 = vpop.f32.mrb[0].mxu0
        %1084 = vmatprep.mubr.f32.mxu0 0.0
        %1085 = vmatmul.mubr.f32.gmra.mrb[0].mxu0 %v920
        %v1086 = vpop.f32.mrb[0].mxu0
        %v1087 = vadd.f32 %v905, %v1086
        %v1088 = vpop.f32.mrb[0].mxu0
        %1089 = vmatprep.mubr.f32.mxu0 0.0
        %1090 = vmatmul.mubr.f32.gmra.mrb[0].mxu0 %v922
        %v1091 = vpop.f32.mrb[0].mxu0
        %v1092 = vadd.f32 %v910, %v1091
        %v1093 = vpop.f32.mrb[0].mxu0
        %1094 = vmatprep.mubr.f32.mxu0 0.0
        %1095 = vmatmul.mubr.f32.gmra.mrb[0].mxu0 %v924
        %v1096 = vpop.f32.mrb[0].mxu0
        %v1097 = vadd.f32 %v915, %v1096
        %v1098 = vpop.f32.mrb[0].mxu0
        %1099 = vdwg.mxu0
        %1101 = vset.pattern.permute.xlu0 0
        %1102 = vperm.xlu0 %1101, %v271
        %v1103 = vpop.permute.xlu0 %1102
        %1106 = vset.pattern.permute.xlu0 0
        %1107 = vperm.xlu0 %1106, %v272
        %v1108 = vpop.permute.xlu0 %1107
        %1111 = vset.pattern.permute.xlu0 0
        %1112 = vperm.xlu0 %1111, %v273
        %v1113 = vpop.permute.xlu0 %1112
        %1116 = vset.pattern.permute.xlu0 0
        %1117 = vperm.xlu0 %1116, %v274
        %v1118 = vpop.permute.xlu0 %1117
        %v1120 = vadd.f32 %v993, %v1103
        %v1121 = vadd.f32 %v995, %v1103
        %v1122 = vadd.f32 %v1082, %v1103
        %v1123 = vadd.f32 %v999, %v1108
        %v1124 = vadd.f32 %v1001, %v1108
        %v1125 = vadd.f32 %v1087, %v1108
        %v1126 = vadd.f32 %v1005, %v1113
        %v1127 = vadd.f32 %v1007, %v1113
        %v1128 = vadd.f32 %v1092, %v1113
        %v1129 = vadd.f32 %v1011, %v1118
        %v1130 = vadd.f32 %v1013, %v1118
        %v1131 = vadd.f32 %v1097, %v1118
        %v1132 = vmax.f32 %v1120, 0.0
        %v1133 = vmax.f32 %v1121, 0.0
        %v1134 = vmax.f32 %v1122, 0.0
        %v1135 = vmax.f32 %v1123, 0.0
        %v1136 = vmax.f32 %v1124, 0.0
        %v1137 = vmax.f32 %v1125, 0.0
        %v1138 = vmax.f32 %v1126, 0.0
        %v1139 = vmax.f32 %v1127, 0.0
        %v1140 = vmax.f32 %v1128, 0.0
        %v1141 = vmax.f32 %v1129, 0.0
        %v1142 = vmax.f32 %v1130, 0.0
        %v1143 = vmax.f32 %v1131, 0.0
        %1145 = vset.pattern.permute.xlu0 0
        %1146 = vperm.xlu0 %1145, %v275
        %v1147 = vpop.permute.xlu0 %1146
        %v1150 = vsel %vm524, %v262, 0
        %1152 = vmatprep.subr.mxu0 %v1133
        %1153 = vmatpush1.msra.mxu0 %v1132
        %1154 = vmatprep.subr.mxu0 %v1136
        %1155 = vmatpush1.msra.mxu0 %v1135
        %1156 = vmatprep.subr.mxu0 %v1139
        %1157 = vmatpush1.msra.mxu0 %v1138
        %1158 = vmatprep.subr.mxu0 %v1142
        %1159 = vmatpush1.msra.mxu0 %v1141
        %1160 = vmatprep.subr.mxu0 0.0
        %1161 = vmatpush1.msra.mxu0 0.0
        %1162 = vmatprep.subr.mxu0 0.0
        %1163 = vmatpush1.msra.mxu0 0.0
        %1164 = vmatprep.subr.mxu0 0.0
        %1165 = vmatpush1.msra.mxu0 0.0
        %1166 = vmatprep.subr.mxu0 0.0
        %1167 = vmatpush1.msra.mxu0 0.0
        %1168 = vmatprep.subr.mxu0 0.0
        %1169 = vmatpush1.msra.mxu0 0.0
        %1170 = vmatprep.subr.mxu0 0.0
        %1171 = vmatpush1.msra.mxu0 0.0
        %1172 = vmatprep.subr.mxu0 0.0
        %1173 = vmatpush1.msra.mxu0 0.0
        %1174 = vmatprep.subr.mxu0 0.0
        %1175 = vmatpush1.msra.mxu0 0.0
        %1176 = vmatprep.subr.mxu0 0.0
        %1177 = vmatpush1.msra.mxu0 0.0
        %1178 = vmatprep.subr.mxu0 0.0
        %1179 = vmatpush1.msra.mxu0 0.0
        %1180 = vmatprep.subr.mxu0 0.0
        %1181 = vmatpush1.msra.mxu0 0.0
        %1182 = vmatprep.subr.mxu0 0.0
        %1183 = vmatpush1.msra.mxu0 0.0
        %1184 = vmatprep.subr.mxu0 0.0
        %1185 = vmatpush1.msra.mxu0 0.0
        %1186 = vmatprep.subr.mxu0 0.0
        %1187 = vmatpush1.msra.mxu0 0.0
        %1188 = vmatprep.subr.mxu0 0.0
        %1189 = vmatpush1.msra.mxu0 0.0
        %1190 = vmatprep.subr.mxu0 0.0
        %1191 = vmatpush1.msra.mxu0 0.0
        %1192 = vmatprep.subr.mxu0 0.0
        %1193 = vmatpush1.msra.mxu0 0.0
        %1194 = vmatprep.subr.mxu0 0.0
        %1195 = vmatpush1.msra.mxu0 0.0
        %1196 = vmatprep.subr.mxu0 0.0
        %1197 = vmatpush1.msra.mxu0 0.0
        %1198 = vmatprep.subr.mxu0 0.0
        %1199 = vmatpush1.msra.mxu0 0.0
        %1200 = vmatprep.subr.mxu0 0.0
        %1201 = vmatpush1.msra.mxu0 0.0
        %1202 = vmatprep.subr.mxu0 0.0
        %1203 = vmatpush1.msra.mxu0 0.0
        %1204 = vmatprep.subr.mxu0 0.0
        %1205 = vmatpush1.msra.mxu0 0.0
        %1206 = vmatprep.subr.mxu0 0.0
        %1207 = vmatpush1.msra.mxu0 0.0
        %1208 = vmatprep.subr.mxu0 0.0
        %1209 = vmatpush1.msra.mxu0 0.0
        %1210 = vmatprep.subr.mxu0 0.0
        %1211 = vmatpush1.msra.mxu0 0.0
        %1212 = vmatprep.subr.mxu0 0.0
        %1213 = vmatpush1.msra.mxu0 0.0
        %1214 = vmatprep.subr.mxu0 0.0
        %1215 = vmatpush1.msra.mxu0 0.0
        %1216 = vmatprep.mubr.f32.mxu0 0.0
        %1217 = vmatmul.mubr.f32.gmra.mrb[0].mxu0 %v1150
        %v1218 = vpop.f32.mrb[0].mxu0
        %v1219 = vadd.f32 %v1147, %v1218
        %v1220 = vpop.f32.mrb[0].mxu0
        %v1221 = vadd.f32 %v1147, %v1220
        %1222 = vdwg.mxu0
        %1223 = vmatprep.subr.mxu0 0.0
        %1224 = vmatpush1.msra.mxu0 %v1134
        %1225 = vmatprep.subr.mxu0 0.0
        %1226 = vmatpush1.msra.mxu0 %v1137
        %1227 = vmatprep.subr.mxu0 0.0
        %1228 = vmatpush1.msra.mxu0 %v1140
        %1229 = vmatprep.subr.mxu0 0.0
        %1230 = vmatpush1.msra.mxu0 %v1143
        %1231 = vmatprep.subr.mxu0 0.0
        %1232 = vmatpush1.msra.mxu0 0.0
        %1233 = vmatprep.subr.mxu0 0.0
        %1234 = vmatpush1.msra.mxu0 0.0
        %1235 = vmatprep.subr.mxu0 0.0
        %1236 = vmatpush1.msra.mxu0 0.0
        %1237 = vmatprep.subr.mxu0 0.0
        %1238 = vmatpush1.msra.mxu0 0.0
        %1239 = vmatprep.subr.mxu0 0.0
        %1240 = vmatpush1.msra.mxu0 0.0
        %1241 = vmatprep.subr.mxu0 0.0
        %1242 = vmatpush1.msra.mxu0 0.0
        %1243 = vmatprep.subr.mxu0 0.0
        %1244 = vmatpush1.msra.mxu0 0.0
        %1245 = vmatprep.subr.mxu0 0.0
        %1246 = vmatpush1.msra.mxu0 0.0
        %1247 = vmatprep.subr.mxu0 0.0
        %1248 = vmatpush1.msra.mxu0 0.0
        %1249 = vmatprep.subr.mxu0 0.0
        %1250 = vmatpush1.msra.mxu0 0.0
        %1251 = vmatprep.subr.mxu0 0.0
        %1252 = vmatpush1.msra.mxu0 0.0
        %1253 = vmatprep.subr.mxu0 0.0
        %1254 = vmatpush1.msra.mxu0 0.0
        %1255 = vmatprep.subr.mxu0 0.0
        %1256 = vmatpush1.msra.mxu0 0.0
        %1257 = vmatprep.subr.mxu0 0.0
        %1258 = vmatpush1.msra.mxu0 0.0
        %1259 = vmatprep.subr.mxu0 0.0
        %1260 = vmatpush1.msra.mxu0 0.0
        %1261 = vmatprep.subr.mxu0 0.0
        %1262 = vmatpush1.msra.mxu0 0.0
        %1263 = vmatprep.subr.mxu0 0.0
        %1264 = vmatpush1.msra.mxu0 0.0
        %1265 = vmatprep.subr.mxu0 0.0
        %1266 = vmatpush1.msra.mxu0 0.0
        %1267 = vmatprep.subr.mxu0 0.0
        %1268 = vmatpush1.msra.mxu0 0.0
        %1269 = vmatprep.subr.mxu0 0.0
        %1270 = vmatpush1.msra.mxu0 0.0
        %1271 = vmatprep.subr.mxu0 0.0
        %1272 = vmatpush1.msra.mxu0 0.0
        %1273 = vmatprep.subr.mxu0 0.0
        %1274 = vmatpush1.msra.mxu0 0.0
        %1275 = vmatprep.subr.mxu0 0.0
        %1276 = vmatpush1.msra.mxu0 0.0
        %1277 = vmatprep.subr.mxu0 0.0
        %1278 = vmatpush1.msra.mxu0 0.0
        %1279 = vmatprep.subr.mxu0 0.0
        %1280 = vmatpush1.msra.mxu0 0.0
        %1281 = vmatprep.subr.mxu0 0.0
        %1282 = vmatpush1.msra.mxu0 0.0
        %1283 = vmatprep.subr.mxu0 0.0
        %1284 = vmatpush1.msra.mxu0 0.0
        %1285 = vmatprep.subr.mxu0 0.0
        %1286 = vmatpush1.msra.mxu0 0.0
        %1287 = vmatprep.mubr.f32.mxu0 0.0
        %1288 = vmatmul.mubr.f32.gmra.mrb[0].mxu0 %v1150
        %v1289 = vpop.f32.mrb[0].mxu0
        %v1290 = vadd.f32 %v1147, %v1289
        %v1291 = vpop.f32.mrb[0].mxu0
        %1292 = vdwg.mxu0
        %v1295 = vcombine.low %v1219, %v1221
        %1297 = vst [vmem:[%s241] sm:$0xff] %v1295
        %1298 = vst [vmem:[%s241 + $0x8] sm:$0xf] %v1290
        %s1299 = sand.u32 %s120, 1
        %s1300 = scalar_lea.sflag [#allocation4], %s1299
        %s1301 = sand.u32 %s120, 1
        %s1302 = smul.addr %s1301, 12
        %s1303 = scalar_lea.vmem [#allocation3], %s1302
        // Predicated region
        $region60: #{tpu_custom_call.1} parent=54 // pred_check
          %p1304 = pneg %p130
        $region61: #{tpu_custom_call.1} parent=54 // pred_check_branch
          %1306 = sbr.rel (%p1304) target = $region63
        $region62: #{tpu_custom_call.1} parent=54 // pred_region
          %s1307 = smul.u32 3, %s18
          %s1309 = ssub.s32 192, 192
          %1310 = vsyncadd %s1300, %s1309
          %s1311 = smul.addr %s1307, 64
          %s1312 = scalar_lea.hbm %s4, %s1311
          %s1314 = sshll.u32 %s1303, 4
          %s1315 = int_to_ptr.vmem [resolvable:$true] %s1314
          %1317 = dma.vmem_to_hbm [thread:$0]  %s1315, 192, %s1312, %s1300
        $region63: #{tpu_custom_call.1} parent=54 // pred_fallthru
          _
      $region55: #{tpu_custom_call.1} parent=5 // pred_fallthru
        _
      %p1318 = scmp.le.s32.totalorder 2, %s13
      // Predicated region
      $region64: #{tpu_custom_call.1} parent=5 // pred_check
        %p1319 = pneg %p1318
      $region65: #{tpu_custom_call.1} parent=5 // pred_check_branch
        %1321 = sbr.rel (%p1319) target = $region67
      $region66: #{tpu_custom_call.1} parent=5 // pred_region
        %s1322 = ssub.s32 %s13, 2
        // Predicated region
        $region68: #{tpu_custom_call.1} parent=66 // pred_check
          %p1323 = pneg %p136
        $region69: #{tpu_custom_call.1} parent=66 // pred_check_branch
          %1325 = sbr.rel (%p1323) target = $region71
        $region70: #{tpu_custom_call.1} parent=66 // pred_region
          %s1326 = sand.u32 %s121, 1
          %s1327 = scalar_lea.sflag [#allocation4], %s1326
          %s1328 = sand.u32 %s121, 1
          %s1329 = smul.addr %s1328, 12
          %s1330 = scalar_lea.vmem [#allocation3], %s1329
          %1331 = dma.done %s1327, 192
        $region71: #{tpu_custom_call.1} parent=66 // pred_fallthru
          _
      $region67: #{tpu_custom_call.1} parent=5 // pred_fallthru
        _
    $region6: #{tpu_custom_call.1} parent=1 // loop_footer
      %s17 = sadd.s32 1, %s13
    $region7: #{tpu_custom_call.1} parent=1 // loop_footer_branch
      %12 = sbr.rel target = $region3
    $region8: #{tpu_custom_call.1} parent=1 // loop_exit
      _
    %1332 = vsyncpa [#allocation4], 1
    %s1333 = scalar_lea.sflag [#allocation4], 1
    %1334 = vsyncpa %s1333, 1

</llo_original>
